<compile_context>
chip_gen: v5e
topology: v5e:2x2
jax: 0.10.0
libtpu: 0.0.40
codegen_flags: <defaults>
</compile_context>

<pallas_src>
import math

import jax
import jax.numpy as jnp
from jax.experimental import pallas as pl
from jax.experimental.pallas import tpu as pltpu


def _round_up(v, m):
    return ((v + m - 1) // m) * m


def _feature_opt_kernel(x_ref, halo_ref, mp_ref, mn_ref,
                        w0_ref, w1_ref, w2_ref, bc_ref,
                        wfc_ref, bfc_ref, o_ref):
    # x_ref:   (TILE_M, D) row tile of the input            (streamed)
    # halo_ref:(2, D)  prev-tile-last row / next-tile-first row (streamed, tiny)
    # mp/mn:   (TILE_M, 1) per-row masks: 0 at batch starts / batch ends
    # w0/w1/w2:(D, D) conv taps, bc: (1, D) f32 conv bias   (resident)
    # wfc:     (D, D) fc weight,  bfc: (1, D) f32 fc bias   (resident)
    # o_ref:   (TILE_M, D)
    dt = x_ref.dtype
    tm = x_ref.shape[0]

    x0 = x_ref[...]
    row = jax.lax.broadcasted_iota(jnp.int32, (tm, 1), 0)

    # x[t-1]: rotate rows down by 1 (XLU), patch row 0 with the halo row,
    # then zero rows that are the first row of a batch.
    xm1 = pltpu.roll(x0, 1, 0)
    xm1 = jnp.where(row == 0, halo_ref[0:1, :], xm1)
    xm1 = xm1 * mp_ref[...]

    # x[t+1]: rotate rows up by 1 (shift = tm-1), patch last row with halo,
    # then zero rows that are the last row of a batch.
    xp1 = pltpu.roll(x0, tm - 1, 0)
    xp1 = jnp.where(row == tm - 1, halo_ref[1:2, :], xp1)
    xp1 = xp1 * mn_ref[...]

    h = jnp.dot(xm1, w0_ref[...], preferred_element_type=jnp.float32)
    h = h + jnp.dot(x0, w1_ref[...], preferred_element_type=jnp.float32)
    h = h + jnp.dot(xp1, w2_ref[...], preferred_element_type=jnp.float32)
    h = h + bc_ref[...]                 # f32 conv bias, broadcast over rows
    h = jnp.maximum(h, 0.0)             # ReLU
    # TODO(synk): Dropout(p=0.3) is inference-mode identity here; training-mode
    # masking would need pltpu.prng_seed / pltpu.stateful_bernoulli in-kernel.
    y = jnp.dot(h.astype(dt), wfc_ref[...], preferred_element_type=jnp.float32)
    y = y + bfc_ref[...]                # f32 fc bias
    o_ref[...] = y.astype(o_ref.dtype)


def feature_optimization_block(x, conv_w, conv_b, fc_w, fc_b, *, tile_m=512):
    """x: (batch, seq, d_model). Weights in PyTorch layout:
       conv_w (d_model, d_model, 3), conv_b (d_model,),
       fc_w (d_model, d_model), fc_b (d_model,)."""
    B, S, D = x.shape
    dt = x.dtype
    isz = jnp.dtype(dt).itemsize
    sub = max(8, 8 * (4 // isz))            # sublane multiple: 8 f32 / 16 bf16 / 32 i8

    M = B * S
    D_pad = _round_up(D, 128)               # lane-dense last dim
    tile_m = max(sub, min(_round_up(tile_m, sub), _round_up(M, sub)))
    M_pad = _round_up(M, tile_m)
    n_tiles = M_pad // tile_m

    # Single streamed copy of x (pad only if needed).
    x_flat = x.reshape(M, D)
    if (M_pad, D_pad) != (M, D):
        x_flat = jnp.pad(x_flat, ((0, M_pad - M), (0, D_pad - D)))

    # Per-tile halo rows: halo[i, 0] = x[i*tile_m - 1] (or 0), halo[i, 1] =
    # x[(i+1)*tile_m] (or 0).  Batch-boundary zeroing is done by the masks.
    xg = jnp.pad(x_flat, ((1, 1), (0, 0)))
    starts = jnp.arange(n_tiles) * tile_m
    halo = jnp.stack([xg[starts], xg[starts + tile_m + 1]], axis=1)  # (n_tiles,2,D_pad)

    # Row masks: 0 where x[t-1] / x[t+1] would cross a batch boundary.
    rows = jnp.arange(M_pad)
    in_rng = rows < M
    mask_prev = (in_rng & ((rows % S) != 0)).astype(dt).reshape(M_pad, 1)
    mask_next = (in_rng & ((rows % S) != (S - 1))).astype(dt).reshape(M_pad, 1)

    def pad_mat(w):                          # (D, D) -> (D_pad, D_pad), act dtype
        if D_pad != D:
            w = jnp.pad(w, ((0, D_pad - D), (0, D_pad - D)))
        return w.astype(dt)

    def pad_vec(b):                          # (D,) -> (1, D_pad), kept f32
        if D_pad != D:
            b = jnp.pad(b, (0, D_pad - D))
        return b.reshape(1, D_pad).astype(jnp.float32)

    # PyTorch conv_w[o, i, k]; tap k multiplies x[t + k - 1]. Store as (in, out).
    w0 = pad_mat(conv_w[:, :, 0].T)
    w1 = pad_mat(conv_w[:, :, 1].T)
    w2 = pad_mat(conv_w[:, :, 2].T)
    bc = pad_vec(conv_b)
    wfc = pad_mat(fc_w.T)
    bfc = pad_vec(fc_b)

    row_spec = pl.BlockSpec((tile_m, D_pad), lambda i: (i, 0))
    halo_spec = pl.BlockSpec((None, 2, D_pad), lambda i: (i, 0, 0))
    mask_spec = pl.BlockSpec((tile_m, 1), lambda i: (i, 0))
    mat_spec = pl.BlockSpec((D_pad, D_pad), lambda i: (0, 0))
    vec_spec = pl.BlockSpec((1, D_pad), lambda i: (0, 0))

    cost = pl.CostEstimate(
        flops=2 * M_pad * D_pad * D_pad * 4,
        transcendentals=0,
        bytes_accessed=(isz * (2 * M_pad * D_pad + 4 * D_pad * D_pad)
                        + 2 * M_pad * isz                 # masks
                        + 2 * n_tiles * D_pad * isz       # halo
                        + 2 * D_pad * 4),                 # f32 biases
    )

    # VMEM budget: double-buffered streamed tiles + resident weights + f32 temps.
    need = (2 * 2 * tile_m * D_pad * isz            # x tile + out tile (dbl-buf)
            + 2 * 4 * D_pad * D_pad * isz           # conv/fc weights (dbl-buf)
            + 2 * 2 * D_pad * 4                     # f32 biases
            + 2 * (2 * tile_m * isz + 2 * D_pad * isz)  # masks + halo
            + 4 * tile_m * D_pad * 4)               # f32 intermediates
    try:
        cap = int(pltpu.get_tpu_info().vmem_capacity_bytes)
    except Exception:
        cap = 64 << 20                              # conservative fallback
    vmem_limit = int(min(max(need + (8 << 20), 32 << 20), cap - (12 << 20)))
    vmem_limit = max(vmem_limit, 16 << 20)

    out = pl.pallas_call(
        _feature_opt_kernel,
        out_shape=jax.ShapeDtypeStruct((M_pad, D_pad), dt),
        grid_spec=pltpu.PrefetchScalarGridSpec(
            num_scalar_prefetch=0,
            grid=(n_tiles,),
            in_specs=[row_spec, halo_spec, mask_spec, mask_spec,
                      mat_spec, mat_spec, mat_spec, vec_spec,
                      mat_spec, vec_spec],
            out_specs=row_spec,
        ),
        compiler_params=pltpu.CompilerParams(
            dimension_semantics=("parallel",),
            vmem_limit_bytes=vmem_limit,
        ),
        cost_estimate=cost,
    )(x_flat, halo, mask_prev, mask_next, w0, w1, w2, bc, wfc, bfc)

    if (M_pad, D_pad) != (M, D):
        out = out[:M, :D]
    return out.reshape(B, S, D)


def init_params(key, d_model, dtype=jnp.float32):
    """Deterministic init mirroring PyTorch defaults (U(-1/sqrt(fan_in), +))."""
    k1, k2, k3, k4 = jax.random.split(key, 4)
    bnd_c = 1.0 / math.sqrt(d_model * 3)   # Conv1d fan_in = in_ch * kernel_size
    bnd_f = 1.0 / math.sqrt(d_model)       # Linear fan_in = d_model
    conv_w = jax.random.uniform(k1, (d_model, d_model, 3), dtype, -bnd_c, bnd_c)
    conv_b = jax.random.uniform(k2, (d_model,), dtype, -bnd_c, bnd_c)
    fc_w = jax.random.uniform(k3, (d_model, d_model), dtype, -bnd_f, bnd_f)
    fc_b = jax.random.uniform(k4, (d_model,), dtype, -bnd_f, bnd_f)
    return conv_w, conv_b, fc_w, fc_b


def reference(x, conv_w, conv_b, fc_w, fc_b):
    """Pure-JAX reference of the PyTorch forward (dropout in eval mode)."""
    B, S, D = x.shape
    x_prev = jnp.pad(x, ((0, 0), (1, 0), (0, 0)))[:, :S, :]
    x_next = jnp.pad(x, ((0, 0), (0, 1), (0, 0)))[:, 1:, :]
    h = (x_prev @ conv_w[:, :, 0].T
         + x @ conv_w[:, :, 1].T
         + x_next @ conv_w[:, :, 2].T
         + conv_b)
    h = jnp.maximum(h, 0.0)
    return h @ fc_w.T + fc_b


if __name__ == "__main__":
    key = jax.random.PRNGKey(0)
    kx, kp = jax.random.split(key)

    batch, seq, d_model = 2, 8, 32
    x = jax.random.normal(kx, (batch, seq, d_model), dtype=jnp.float32)
    conv_w, conv_b, fc_w, fc_b = init_params(kp, d_model)

    out = feature_optimization_block(x, conv_w, conv_b, fc_w, fc_b)
    out = jax.block_until_ready(out)
    ref = reference(x, conv_w, conv_b, fc_w, fc_b)
    assert out.shape == x.shape
    assert jnp.allclose(out, ref, atol=1e-4, rtol=1e-4), \
        float(jnp.max(jnp.abs(out - ref)))

    # Multi-tile coverage: halo rows across tiles, internal batch boundaries,
    # and a padded tail (M=24, tile_m=16 -> 2 tiles, M_pad=32).
    kx2, kp2 = jax.random.split(jax.random.PRNGKey(1))
    x2 = jax.random.normal(kx2, (3, 8, 32), dtype=jnp.float32)
    p2 = init_params(kp2, 32)
    out2 = jax.block_until_ready(
        feature_optimization_block(x2, *p2, tile_m=16))
    ref2 = reference(x2, *p2)
    assert jnp.allclose(out2, ref2, atol=1e-4, rtol=1e-4), \
        float(jnp.max(jnp.abs(out2 - ref2)))

    print("KERNEL_OK")
</pallas_src>

<mosaic_0001>
module attributes {stable_mosaic.version = 11 : i64} {
  func.func @_feature_opt_kernel(%arg0: i32, %arg1: memref<16x128xf32, #tpu.memory_space<vmem>>, %arg2: memref<1x2x128xf32, #tpu.memory_space<vmem>>, %arg3: memref<16x1xf32, #tpu.memory_space<vmem>>, %arg4: memref<16x1xf32, #tpu.memory_space<vmem>>, %arg5: memref<128x128xf32, #tpu.memory_space<vmem>>, %arg6: memref<128x128xf32, #tpu.memory_space<vmem>>, %arg7: memref<128x128xf32, #tpu.memory_space<vmem>>, %arg8: memref<1x128xf32, #tpu.memory_space<vmem>>, %arg9: memref<128x128xf32, #tpu.memory_space<vmem>>, %arg10: memref<1x128xf32, #tpu.memory_space<vmem>>, %arg11: memref<16x128xf32, #tpu.memory_space<vmem>>) attributes {dimension_semantics = [#tpu.dimension_semantics<parallel>], iteration_bounds = array<i64: 1>, scalar_prefetch = 0 : i64, scratch_operands = 0 : i64, tpu.core_type = #tpu.core_type<tc>, window_params = [{transform_indices = @transform_0, window_bounds = array<i64: 16, 128>}, {transform_indices = @transform_1, window_bounds = array<i64: 1, 2, 128>}, {transform_indices = @transform_2, window_bounds = array<i64: 16, 1>}, {transform_indices = @transform_3, window_bounds = array<i64: 16, 1>}, {pipeline_mode = #tpu.pipeline_mode<synchronous>, transform_indices = @transform_4, window_bounds = array<i64: 128, 128>}, {pipeline_mode = #tpu.pipeline_mode<synchronous>, transform_indices = @transform_5, window_bounds = array<i64: 128, 128>}, {pipeline_mode = #tpu.pipeline_mode<synchronous>, transform_indices = @transform_6, window_bounds = array<i64: 128, 128>}, {pipeline_mode = #tpu.pipeline_mode<synchronous>, transform_indices = @transform_7, window_bounds = array<i64: 1, 128>}, {pipeline_mode = #tpu.pipeline_mode<synchronous>, transform_indices = @transform_8, window_bounds = array<i64: 128, 128>}, {pipeline_mode = #tpu.pipeline_mode<synchronous>, transform_indices = @transform_9, window_bounds = array<i64: 1, 128>}, {transform_indices = @transform_10, window_bounds = array<i64: 16, 128>}]} {
    %c0 = arith.constant 0 : index
    %c0_0 = arith.constant 0 : index
    %0 = vector.load %arg1[%c0, %c0_0] : memref<16x128xf32, #tpu.memory_space<vmem>>, vector<16x128xf32>
    %1 = tpu.iota {dimensions = array<i32: 0>} : vector<16x1xi32>
    %c1_i32 = arith.constant 1 : i32
    %2 = tpu.dynamic_rotate %0 by %c1_i32 dim 0 : vector<16x128xf32>, i32 -> vector<16x128xf32>
    %c0_i32 = arith.constant 0 : i32
    %3 = vector.broadcast %c0_i32 : i32 to vector<16x1xi32>
    %4 = arith.cmpi eq, %1, %3 : vector<16x1xi32>
    %c0_1 = arith.constant 0 : index
    %c0_2 = arith.constant 0 : index
    %c0_3 = arith.constant 0 : index
    %5 = vector.load %arg2[%c0_1, %c0_2, %c0_3] : memref<1x2x128xf32, #tpu.memory_space<vmem>>, vector<1x1x128xf32>
    %6 = vector.shape_cast %5 : vector<1x1x128xf32> to vector<1x128xf32>
    %7 = vector.shape_cast %4 : vector<16x1xi1> to vector<16x1xi1>
    %8 = vector.broadcast %7 : vector<16x1xi1> to vector<16x128xi1>
    %9 = vector.shape_cast %6 : vector<1x128xf32> to vector<1x128xf32>
    %10 = vector.broadcast %9 : vector<1x128xf32> to vector<16x128xf32>
    %11 = arith.select %8, %10, %2 : vector<16x128xi1>, vector<16x128xf32>
    %c0_4 = arith.constant 0 : index
    %c0_5 = arith.constant 0 : index
    %12 = vector.load %arg3[%c0_4, %c0_5] : memref<16x1xf32, #tpu.memory_space<vmem>>, vector<16x1xf32>
    %13 = vector.broadcast %12 : vector<16x1xf32> to vector<16x128xf32>
    %14 = arith.mulf %11, %13 : vector<16x128xf32>
    %c15_i32 = arith.constant 15 : i32
    %15 = tpu.dynamic_rotate %0 by %c15_i32 dim 0 : vector<16x128xf32>, i32 -> vector<16x128xf32>
    %c15_i32_6 = arith.constant 15 : i32
    %16 = vector.broadcast %c15_i32_6 : i32 to vector<16x1xi32>
    %17 = arith.cmpi eq, %1, %16 : vector<16x1xi32>
    %c0_7 = arith.constant 0 : index
    %c1 = arith.constant 1 : index
    %c0_8 = arith.constant 0 : index
    %18 = vector.load %arg2[%c0_7, %c1, %c0_8] : memref<1x2x128xf32, #tpu.memory_space<vmem>>, vector<1x1x128xf32>
    %19 = vector.shape_cast %18 : vector<1x1x128xf32> to vector<1x128xf32>
    %20 = vector.shape_cast %17 : vector<16x1xi1> to vector<16x1xi1>
    %21 = vector.broadcast %20 : vector<16x1xi1> to vector<16x128xi1>
    %22 = vector.shape_cast %19 : vector<1x128xf32> to vector<1x128xf32>
    %23 = vector.broadcast %22 : vector<1x128xf32> to vector<16x128xf32>
    %24 = arith.select %21, %23, %15 : vector<16x128xi1>, vector<16x128xf32>
    %c0_9 = arith.constant 0 : index
    %c0_10 = arith.constant 0 : index
    %25 = vector.load %arg4[%c0_9, %c0_10] : memref<16x1xf32, #tpu.memory_space<vmem>>, vector<16x1xf32>
    %26 = vector.broadcast %25 : vector<16x1xf32> to vector<16x128xf32>
    %27 = arith.mulf %24, %26 : vector<16x128xf32>
    %c0_11 = arith.constant 0 : index
    %c0_12 = arith.constant 0 : index
    %28 = vector.load %arg5[%c0_11, %c0_12] : memref<128x128xf32, #tpu.memory_space<vmem>>, vector<128x128xf32>
    %cst = arith.constant dense<0.000000e+00> : vector<16x128xf32>
    %29 = tpu.matmul %14, %28, %cst {dimension_numbers = #tpu.dot_dimension_numbers<[1], [0], [0], [1], [0, 0, 1, 1], [], []>} : vector<16x128xf32>, vector<128x128xf32>, vector<16x128xf32> -> vector<16x128xf32>
    %c0_13 = arith.constant 0 : index
    %c0_14 = arith.constant 0 : index
    %30 = vector.load %arg6[%c0_13, %c0_14] : memref<128x128xf32, #tpu.memory_space<vmem>>, vector<128x128xf32>
    %cst_15 = arith.constant dense<0.000000e+00> : vector<16x128xf32>
    %31 = tpu.matmul %0, %30, %cst_15 {dimension_numbers = #tpu.dot_dimension_numbers<[1], [0], [0], [1], [0, 0, 1, 1], [], []>} : vector<16x128xf32>, vector<128x128xf32>, vector<16x128xf32> -> vector<16x128xf32>
    %32 = arith.addf %29, %31 : vector<16x128xf32>
    %c0_16 = arith.constant 0 : index
    %c0_17 = arith.constant 0 : index
    %33 = vector.load %arg7[%c0_16, %c0_17] : memref<128x128xf32, #tpu.memory_space<vmem>>, vector<128x128xf32>
    %cst_18 = arith.constant dense<0.000000e+00> : vector<16x128xf32>
    %34 = tpu.matmul %27, %33, %cst_18 {dimension_numbers = #tpu.dot_dimension_numbers<[1], [0], [0], [1], [0, 0, 1, 1], [], []>} : vector<16x128xf32>, vector<128x128xf32>, vector<16x128xf32> -> vector<16x128xf32>
    %35 = arith.addf %32, %34 : vector<16x128xf32>
    %c0_19 = arith.constant 0 : index
    %c0_20 = arith.constant 0 : index
    %36 = vector.load %arg8[%c0_19, %c0_20] : memref<1x128xf32, #tpu.memory_space<vmem>>, vector<1x128xf32>
    %37 = vector.broadcast %36 : vector<1x128xf32> to vector<16x128xf32>
    %38 = arith.addf %35, %37 : vector<16x128xf32>
    %cst_21 = arith.constant 0.000000e+00 : f32
    %39 = vector.broadcast %cst_21 : f32 to vector<16x128xf32>
    %40 = arith.maximumf %38, %39 : vector<16x128xf32>
    %c0_22 = arith.constant 0 : index
    %c0_23 = arith.constant 0 : index
    %41 = vector.load %arg9[%c0_22, %c0_23] : memref<128x128xf32, #tpu.memory_space<vmem>>, vector<128x128xf32>
    %cst_24 = arith.constant dense<0.000000e+00> : vector<16x128xf32>
    %42 = tpu.matmul %40, %41, %cst_24 {dimension_numbers = #tpu.dot_dimension_numbers<[1], [0], [0], [1], [0, 0, 1, 1], [], []>} : vector<16x128xf32>, vector<128x128xf32>, vector<16x128xf32> -> vector<16x128xf32>
    %c0_25 = arith.constant 0 : index
    %c0_26 = arith.constant 0 : index
    %43 = vector.load %arg10[%c0_25, %c0_26] : memref<1x128xf32, #tpu.memory_space<vmem>>, vector<1x128xf32>
    %44 = vector.broadcast %43 : vector<1x128xf32> to vector<16x128xf32>
    %45 = arith.addf %42, %44 : vector<16x128xf32>
    %c0_27 = arith.constant 0 : index
    %c0_28 = arith.constant 0 : index
    %46 = vector.load %arg11[%c0_27, %c0_28] : memref<16x128xf32, #tpu.memory_space<vmem>>, vector<16x128xf32>
    tpu.vector_store %arg11[%c0_27, %c0_28], %45 {strides = array<i32>} : memref<16x128xf32, #tpu.memory_space<vmem>>, vector<16x128xf32>,
    return
  }
  func.func @transform_0(%arg0: i32) -> (i32, i32) {
    %c0_i32 = arith.constant 0 : i32
    %c0_i32_0 = arith.constant 0 : i32
    return %arg0, %c0_i32 : i32, i32
  }
  func.func @transform_1(%arg0: i32) -> (i32, i32, i32) {
    %c0_i32 = arith.constant 0 : i32
    %c0_i32_0 = arith.constant 0 : i32
    %c0_i32_1 = arith.constant 0 : i32
    return %arg0, %c0_i32, %c0_i32_0 : i32, i32, i32
  }
  func.func @transform_2(%arg0: i32) -> (i32, i32) {
    %c0_i32 = arith.constant 0 : i32
    %c0_i32_0 = arith.constant 0 : i32
    return %arg0, %c0_i32 : i32, i32
  }
  func.func @transform_3(%arg0: i32) -> (i32, i32) {
    %c0_i32 = arith.constant 0 : i32
    %c0_i32_0 = arith.constant 0 : i32
    return %arg0, %c0_i32 : i32, i32
  }
  func.func @transform_4(%arg0: i32) -> (i32, i32) {
    %c0_i32 = arith.constant 0 : i32
    %c0_i32_0 = arith.constant 0 : i32
    %c0_i32_1 = arith.constant 0 : i32
    return %c0_i32, %c0_i32_0 : i32, i32
  }
  func.func @transform_5(%arg0: i32) -> (i32, i32) {
    %c0_i32 = arith.constant 0 : i32
    %c0_i32_0 = arith.constant 0 : i32
    %c0_i32_1 = arith.constant 0 : i32
    return %c0_i32, %c0_i32_0 : i32, i32
  }
  func.func @transform_6(%arg0: i32) -> (i32, i32) {
    %c0_i32 = arith.constant 0 : i32
    %c0_i32_0 = arith.constant 0 : i32
    %c0_i32_1 = arith.constant 0 : i32
    return %c0_i32, %c0_i32_0 : i32, i32
  }
  func.func @transform_7(%arg0: i32) -> (i32, i32) {
    %c0_i32 = arith.constant 0 : i32
    %c0_i32_0 = arith.constant 0 : i32
    %c0_i32_1 = arith.constant 0 : i32
    return %c0_i32, %c0_i32_0 : i32, i32
  }
  func.func @transform_8(%arg0: i32) -> (i32, i32) {
    %c0_i32 = arith.constant 0 : i32
    %c0_i32_0 = arith.constant 0 : i32
    %c0_i32_1 = arith.constant 0 : i32
    return %c0_i32, %c0_i32_0 : i32, i32
  }
  func.func @transform_9(%arg0: i32) -> (i32, i32) {
    %c0_i32 = arith.constant 0 : i32
    %c0_i32_0 = arith.constant 0 : i32
    %c0_i32_1 = arith.constant 0 : i32
    return %c0_i32, %c0_i32_0 : i32, i32
  }
  func.func @transform_10(%arg0: i32) -> (i32, i32) {
    %c0_i32 = arith.constant 0 : i32
    %c0_i32_0 = arith.constant 0 : i32
    return %arg0, %c0_i32 : i32, i32
  }
}

</mosaic_0001>

<llo_original>
// kernel: tpu_custom_call.1
$region0: #{tpu_custom_call.1}
  #allocation0 [shape = 'u32[]', space=smem, size = 0x4, offset = 0x4, fixed_abs, tag = 'smem constant byte address 0x4 - core index']
  #allocation1 [shape = 'u32[72,128]{1,0:T(1,128)}', space=vmem, size = 0x9000, scoped, tag = 'internal scratch']
  %s0 = inlined_call_operand.vmem [shape: f32[16,128], index: 0, kind: input, shape index: {}]
  %s1 = inlined_call_operand.vmem [shape: f32[1,2,128], index: 1, kind: input, shape index: {}]
  %s2 = inlined_call_operand.vmem [shape: f32[16,1], index: 2, kind: input, shape index: {}]
  %s3 = inlined_call_operand.vmem [shape: f32[16,1], index: 3, kind: input, shape index: {}]
  %s4 = inlined_call_operand.hbm [shape: f32[128,128], index: 4, kind: input, shape index: {}]
  %s5 = inlined_call_operand.hbm [shape: f32[128,128], index: 5, kind: input, shape index: {}]
  %s6 = inlined_call_operand.hbm [shape: f32[128,128], index: 6, kind: input, shape index: {}]
  %s7 = inlined_call_operand.vmem [shape: f32[1,128], index: 7, kind: input, shape index: {}]
  %s8 = inlined_call_operand.hbm [shape: f32[128,128], index: 8, kind: input, shape index: {}]
  %s9 = inlined_call_operand.vmem [shape: f32[1,128], index: 9, kind: input, shape index: {}]
  %s10 = inlined_call_operand.hbm [shape: f32[16,128], index: 10, kind: output, shape index: {}]
  %s11 = sld [smem:[#allocation0]]
  $region66: #{tpu_custom_call.1} parent=0
    _
  %s13 = ssub.s32 1, %s11
  %s14 = scalar_select 0, %s13, %s11
  $region1: #{tpu_custom_call.1} parent=0
    #allocation2 [shape = 'u8[65536]{0}', space=vmem, size = 0x10000, scoped, tag = 'input window, operand 4, single buffered']
    #allocation3 [shape = 's32[1]{0}', space=sflag, size = 0x4, scoped, tag = 'scoped memory for tpu_custom_call.1']
    #allocation4 [shape = 's32[1]{0}', space=sflag, size = 0x4, scoped, tag = 'scoped memory for tpu_custom_call.1']
    #allocation5 [shape = 'u8[65536]{0}', space=vmem, size = 0x10000, scoped, tag = 'input window, operand 5, single buffered']
    #allocation6 [shape = 's32[1]{0}', space=sflag, size = 0x4, scoped, tag = 'scoped memory for tpu_custom_call.1']
    #allocation7 [shape = 'u8[65536]{0}', space=vmem, size = 0x10000, scoped, tag = 'input window, operand 6, single buffered']
    #allocation8 [shape = 'u8[65536]{0}', space=vmem, size = 0x10000, scoped, tag = 'input window, operand 8, single buffered']
    #allocation9 [shape = 's32[1]{0}', space=sflag, size = 0x4, scoped, tag = 'scoped memory for tpu_custom_call.1']
    #allocation10 [shape = 'u8[8192]{0}', space=vmem, size = 0x2000, scoped, tag = 'output window, operand 0, single buffered']
    %15 = vsyncpa [#allocation3], 0
    %16 = vsyncpa [#allocation6], 0
    %17 = vsyncpa [#allocation9], 0
    %18 = vsyncpa [#allocation4], 0
    // Predicated region
    $region2: #{tpu_custom_call.1} parent=1 // pred_check
      _
    $region3: #{tpu_custom_call.1} parent=1 // pred_check_branch
      %20 = sbr.rel (0) target = $region5
    $region4: #{tpu_custom_call.1} parent=1 // pred_region
      _
    $region5: #{tpu_custom_call.1} parent=1 // pred_fallthru
      _
    // Predicated region
    $region6: #{tpu_custom_call.1} parent=1 // pred_check
      _
    $region7: #{tpu_custom_call.1} parent=1 // pred_check_branch
      %22 = sbr.rel (0) target = $region9
    $region8: #{tpu_custom_call.1} parent=1 // pred_region
      _
    $region9: #{tpu_custom_call.1} parent=1 // pred_fallthru
      _
    // Predicated region
    $region10: #{tpu_custom_call.1} parent=1 // pred_check
      _
    $region11: #{tpu_custom_call.1} parent=1 // pred_check_branch
      %24 = sbr.rel (0) target = $region13
    $region12: #{tpu_custom_call.1} parent=1 // pred_region
      _
    $region13: #{tpu_custom_call.1} parent=1 // pred_fallthru
      _
    // Predicated region
    $region14: #{tpu_custom_call.1} parent=1 // pred_check
      _
    $region15: #{tpu_custom_call.1} parent=1 // pred_check_branch
      %26 = sbr.rel (0) target = $region17
    $region16: #{tpu_custom_call.1} parent=1 // pred_region
      _
    $region17: #{tpu_custom_call.1} parent=1 // pred_fallthru
      _
    // Predicated region
    $region18: #{tpu_custom_call.1} parent=1 // pred_check
      _
    $region19: #{tpu_custom_call.1} parent=1 // pred_check_branch
      %28 = sbr.rel (0) target = $region21
    $region20: #{tpu_custom_call.1} parent=1 // pred_region
      %30 = vsyncadd [#allocation3], 0
      %s31 = sshll.u32 %s4, 4
      %s32 = int_to_ptr.hbm [resolvable:$true] %s31
      %s33 = sshll.u32 [#allocation2], 4
      %s34 = int_to_ptr.vmem [resolvable:$true] %s33
      %39 = dma.hbm_to_vmem [thread:$0]  %s32, 2048, %s34, [#allocation3], 128, 128, 8
    $region21: #{tpu_custom_call.1} parent=1 // pred_fallthru
      _
    // Predicated region
    $region22: #{tpu_custom_call.1} parent=1 // pred_check
      _
    $region23: #{tpu_custom_call.1} parent=1 // pred_check_branch
      %41 = sbr.rel (0) target = $region25
    $region24: #{tpu_custom_call.1} parent=1 // pred_region
      %43 = vsyncadd [#allocation6], 0
      %s44 = sshll.u32 %s5, 4
      %s45 = int_to_ptr.hbm [resolvable:$true] %s44
      %s46 = sshll.u32 [#allocation5], 4
      %s47 = int_to_ptr.vmem [resolvable:$true] %s46
      %52 = dma.hbm_to_vmem [thread:$0]  %s45, 2048, %s47, [#allocation6], 128, 128, 8
    $region25: #{tpu_custom_call.1} parent=1 // pred_fallthru
      _
    // Predicated region
    $region26: #{tpu_custom_call.1} parent=1 // pred_check
      _
    $region27: #{tpu_custom_call.1} parent=1 // pred_check_branch
      %54 = sbr.rel (0) target = $region29
    $region28: #{tpu_custom_call.1} parent=1 // pred_region
      %56 = vsyncadd [#allocation6], 0
      %s57 = sshll.u32 %s6, 4
      %s58 = int_to_ptr.hbm [resolvable:$true] %s57
      %s59 = sshll.u32 [#allocation7], 4
      %s60 = int_to_ptr.vmem [resolvable:$true] %s59
      %65 = dma.hbm_to_vmem [thread:$0]  %s58, 2048, %s60, [#allocation6], 128, 128, 8
    $region29: #{tpu_custom_call.1} parent=1 // pred_fallthru
      _
    // Predicated region
    $region30: #{tpu_custom_call.1} parent=1 // pred_check
      _
    $region31: #{tpu_custom_call.1} parent=1 // pred_check_branch
      %67 = sbr.rel (0) target = $region33
    $region32: #{tpu_custom_call.1} parent=1 // pred_region
      _
    $region33: #{tpu_custom_call.1} parent=1 // pred_fallthru
      _
    // Predicated region
    $region34: #{tpu_custom_call.1} parent=1 // pred_check
      _
    $region35: #{tpu_custom_call.1} parent=1 // pred_check_branch
      %69 = sbr.rel (0) target = $region37
    $region36: #{tpu_custom_call.1} parent=1 // pred_region
      %71 = vsyncadd [#allocation9], 0
      %s72 = sshll.u32 %s8, 4
      %s73 = int_to_ptr.hbm [resolvable:$true] %s72
      %s74 = sshll.u32 [#allocation8], 4
      %s75 = int_to_ptr.vmem [resolvable:$true] %s74
      %80 = dma.hbm_to_vmem [thread:$0]  %s73, 2048, %s75, [#allocation9], 128, 128, 8
    $region37: #{tpu_custom_call.1} parent=1 // pred_fallthru
      _
    // Predicated region
    $region38: #{tpu_custom_call.1} parent=1 // pred_check
      _
    $region39: #{tpu_custom_call.1} parent=1 // pred_check_branch
      %82 = sbr.rel (0) target = $region41
    $region40: #{tpu_custom_call.1} parent=1 // pred_region
      _
    $region41: #{tpu_custom_call.1} parent=1 // pred_fallthru
      _
    // Predicated region
    $region42: #{tpu_custom_call.1} parent=1 // pred_check
      _
    $region43: #{tpu_custom_call.1} parent=1 // pred_check_branch
      %84 = sbr.rel (0) target = $region45
    $region44: #{tpu_custom_call.1} parent=1 // pred_region
      %86 = dma.done [#allocation3], 2048
    $region45: #{tpu_custom_call.1} parent=1 // pred_fallthru
      _
    // Predicated region
    $region46: #{tpu_custom_call.1} parent=1 // pred_check
      _
    $region47: #{tpu_custom_call.1} parent=1 // pred_check_branch
      %88 = sbr.rel (0) target = $region49
    $region48: #{tpu_custom_call.1} parent=1 // pred_region
      %90 = dma.done [#allocation6], 2048
    $region49: #{tpu_custom_call.1} parent=1 // pred_fallthru
      _
    // Predicated region
    $region50: #{tpu_custom_call.1} parent=1 // pred_check
      _
    $region51: #{tpu_custom_call.1} parent=1 // pred_check_branch
      %92 = sbr.rel (0) target = $region53
    $region52: #{tpu_custom_call.1} parent=1 // pred_region
      %94 = dma.done [#allocation6], 2048
    $region53: #{tpu_custom_call.1} parent=1 // pred_fallthru
      _
    // Predicated region
    $region54: #{tpu_custom_call.1} parent=1 // pred_check
      _
    $region55: #{tpu_custom_call.1} parent=1 // pred_check_branch
      %96 = sbr.rel (0) target = $region57
    $region56: #{tpu_custom_call.1} parent=1 // pred_region
      %98 = dma.done [#allocation9], 2048
    $region57: #{tpu_custom_call.1} parent=1 // pred_fallthru
      _
    %v99 = vld [vmem:[%s0] sm:$0xff]
    %v100 = vld [vmem:[%s0 + $0x8] sm:$0xff]
    %v101 = vlaneseq
    %v102 = vshrl.u32 %v101, 7
    %v103 = vadd.s32 %v102, 8
    %v104 = vrot.slane %v99, 7
    %v105 = vrot.slane %v100, 7
    %vm106 = vcmp.lt.s32.totalorder %v102, 1
    %v107 = vsel %vm106, %v104, %v105
    %v108 = vsel %vm106, %v105, %v104
    %vm109 = vcmp.eq.s32.totalorder %v102, 0
    %vm110 = vcmp.eq.s32.totalorder %v103, 0
    %v111 = vld [vmem:[%s1] sm:$0x1]
    %v112 = vsel %vm109, 1, 0
    %v113 = vsel %vm110, 1, 0
    %vm114 = vcmp.eq.s32.totalorder %v112, 1
    %vm115 = vcmp.eq.s32.totalorder %v113, 1
    %v116 = vperm.slane %v111, 0
    %v117 = vsel %vm114, %v116, %v108
    %v118 = vsel %vm115, %v116, %v107
    %v119 = vld [vmem:[%s2] sm:$0xff]
    %v120 = vld [vmem:[%s2 + $0x8] sm:$0xff]
    %122 = vset.pattern.permute.xlu0 0
    %123 = vperm.xlu0 %122, %v119
    %v124 = vpop.permute.xlu0 %123
    %127 = vset.pattern.permute.xlu0 0
    %128 = vperm.xlu0 %127, %v120
    %v129 = vpop.permute.xlu0 %128
    %v131 = vmul.f32 %v117, %v124
    %v132 = vmul.f32 %v118, %v129
    %v133 = vrot.slane %v99, 1
    %v134 = vrot.slane %v100, 1
    %vm135 = vcmp.lt.s32.totalorder %v102, 7
    %v136 = vsel %vm135, %v133, %v134
    %v137 = vsel %vm135, %v134, %v133
    %vm138 = vcmp.eq.s32.totalorder %v102, 15
    %vm139 = vcmp.eq.s32.totalorder %v103, 15
    %v140 = vld [vmem:[%s1 + $0x1] sm:$0x1]
    %v141 = vsel %vm138, 1, 0
    %v142 = vsel %vm139, 1, 0
    %vm143 = vcmp.eq.s32.totalorder %v141, 1
    %vm144 = vcmp.eq.s32.totalorder %v142, 1
    %v145 = vperm.slane %v140, 0
    %v146 = vsel %vm143, %v145, %v136
    %v147 = vsel %vm144, %v145, %v137
    %v148 = vld [vmem:[%s3] sm:$0xff]
    %v149 = vld [vmem:[%s3 + $0x8] sm:$0xff]
    %151 = vset.pattern.permute.xlu0 0
    %152 = vperm.xlu0 %151, %v148
    %v153 = vpop.permute.xlu0 %152
    %156 = vset.pattern.permute.xlu0 0
    %157 = vperm.xlu0 %156, %v149
    %v158 = vpop.permute.xlu0 %157
    %v160 = vmul.f32 %v146, %v153
    %v161 = vmul.f32 %v147, %v158
    %v162 = vld [vmem:[#allocation2] sm:$0xff]
    %v163 = vld [vmem:[#allocation2 + $0x8] sm:$0xff]
    %v164 = vld [vmem:[#allocation2 + $0x10] sm:$0xff]
    %v165 = vld [vmem:[#allocation2 + $0x18] sm:$0xff]
    %v166 = vld [vmem:[#allocation2 + $0x20] sm:$0xff]
    %v167 = vld [vmem:[#allocation2 + $0x28] sm:$0xff]
    %v168 = vld [vmem:[#allocation2 + $0x30] sm:$0xff]
    %v169 = vld [vmem:[#allocation2 + $0x38] sm:$0xff]
    %v170 = vld [vmem:[#allocation2 + $0x40] sm:$0xff]
    %v171 = vld [vmem:[#allocation2 + $0x48] sm:$0xff]
    %v172 = vld [vmem:[#allocation2 + $0x50] sm:$0xff]
    %v173 = vld [vmem:[#allocation2 + $0x58] sm:$0xff]
    %v174 = vld [vmem:[#allocation2 + $0x60] sm:$0xff]
    %v175 = vld [vmem:[#allocation2 + $0x68] sm:$0xff]
    %v176 = vld [vmem:[#allocation2 + $0x70] sm:$0xff]
    %v177 = vld [vmem:[#allocation2 + $0x78] sm:$0xff]
    %v178 = vld [vmem:[#allocation5] sm:$0xff]
    %v179 = vld [vmem:[#allocation5 + $0x8] sm:$0xff]
    %v180 = vld [vmem:[#allocation5 + $0x10] sm:$0xff]
    %v181 = vld [vmem:[#allocation5 + $0x18] sm:$0xff]
    %v182 = vld [vmem:[#allocation5 + $0x20] sm:$0xff]
    %v183 = vld [vmem:[#allocation5 + $0x28] sm:$0xff]
    %v184 = vld [vmem:[#allocation5 + $0x30] sm:$0xff]
    %v185 = vld [vmem:[#allocation5 + $0x38] sm:$0xff]
    %v186 = vld [vmem:[#allocation5 + $0x40] sm:$0xff]
    %v187 = vld [vmem:[#allocation5 + $0x48] sm:$0xff]
    %v188 = vld [vmem:[#allocation5 + $0x50] sm:$0xff]
    %v189 = vld [vmem:[#allocation5 + $0x58] sm:$0xff]
    %v190 = vld [vmem:[#allocation5 + $0x60] sm:$0xff]
    %v191 = vld [vmem:[#allocation5 + $0x68] sm:$0xff]
    %v192 = vld [vmem:[#allocation5 + $0x70] sm:$0xff]
    %v193 = vld [vmem:[#allocation5 + $0x78] sm:$0xff]
    %194 = vmatpush.msra.mxu0 %v193
    %195 = vmatpush.msra.mxu0 %v192
    %196 = vmatpush.msra.mxu0 %v191
    %197 = vmatpush.msra.mxu0 %v190
    %198 = vmatpush.msra.mxu0 %v189
    %199 = vmatpush.msra.mxu0 %v188
    %200 = vmatpush.msra.mxu0 %v187
    %201 = vmatpush.msra.mxu0 %v186
    %202 = vmatpush.msra.mxu0 %v185
    %203 = vmatpush.msra.mxu0 %v184
    %204 = vmatpush.msra.mxu0 %v183
    %205 = vmatpush.msra.mxu0 %v182
    %206 = vmatpush.msra.mxu0 %v181
    %207 = vmatpush.msra.mxu0 %v180
    %208 = vmatpush.msra.mxu0 %v179
    %209 = vmatpush.msra.mxu0 %v178
    %210 = vmatmul.f32.gmra.mxu0 %v99
    %v211 = vpop.f32.mrf.mxu0
    %v212 = vadd.f32 0.0, %v211
    %213 = vmatmul.f32.gmra.mxu0 %v100
    %v214 = vpop.f32.mrf.mxu0
    %v215 = vadd.f32 0.0, %v214
    %216 = vdwg.mxu0
    %217 = vmatpush.msra.mxu0 %v177
    %218 = vmatpush.msra.mxu0 %v176
    %219 = vmatpush.msra.mxu0 %v175
    %220 = vmatpush.msra.mxu0 %v174
    %221 = vmatpush.msra.mxu0 %v173
    %222 = vmatpush.msra.mxu0 %v172
    %223 = vmatpush.msra.mxu0 %v171
    %224 = vmatpush.msra.mxu0 %v170
    %225 = vmatpush.msra.mxu0 %v169
    %226 = vmatpush.msra.mxu0 %v168
    %227 = vmatpush.msra.mxu0 %v167
    %228 = vmatpush.msra.mxu0 %v166
    %229 = vmatpush.msra.mxu0 %v165
    %230 = vmatpush.msra.mxu0 %v164
    %231 = vmatpush.msra.mxu0 %v163
    %232 = vmatpush.msra.mxu0 %v162
    %233 = vmatmul.f32.gmra.mxu0 %v131
    %v234 = vpop.f32.mrf.mxu0
    %v235 = vadd.f32 %v212, %v234
    %236 = vmatmul.f32.gmra.mxu0 %v132
    %v237 = vpop.f32.mrf.mxu0
    %v238 = vadd.f32 %v215, %v237
    %239 = vdwg.mxu0
    %v240 = vld [vmem:[#allocation7] sm:$0xff]
    %v241 = vld [vmem:[#allocation7 + $0x8] sm:$0xff]
    %v242 = vld [vmem:[#allocation7 + $0x10] sm:$0xff]
    %v243 = vld [vmem:[#allocation7 + $0x18] sm:$0xff]
    %v244 = vld [vmem:[#allocation7 + $0x20] sm:$0xff]
    %v245 = vld [vmem:[#allocation7 + $0x28] sm:$0xff]
    %v246 = vld [vmem:[#allocation7 + $0x30] sm:$0xff]
    %v247 = vld [vmem:[#allocation7 + $0x38] sm:$0xff]
    %v248 = vld [vmem:[#allocation7 + $0x40] sm:$0xff]
    %v249 = vld [vmem:[#allocation7 + $0x48] sm:$0xff]
    %v250 = vld [vmem:[#allocation7 + $0x50] sm:$0xff]
    %v251 = vld [vmem:[#allocation7 + $0x58] sm:$0xff]
    %v252 = vld [vmem:[#allocation7 + $0x60] sm:$0xff]
    %v253 = vld [vmem:[#allocation7 + $0x68] sm:$0xff]
    %v254 = vld [vmem:[#allocation7 + $0x70] sm:$0xff]
    %v255 = vld [vmem:[#allocation7 + $0x78] sm:$0xff]
    %256 = vmatpush.msra.mxu0 %v255
    %257 = vmatpush.msra.mxu0 %v254
    %258 = vmatpush.msra.mxu0 %v253
    %259 = vmatpush.msra.mxu0 %v252
    %260 = vmatpush.msra.mxu0 %v251
    %261 = vmatpush.msra.mxu0 %v250
    %262 = vmatpush.msra.mxu0 %v249
    %263 = vmatpush.msra.mxu0 %v248
    %264 = vmatpush.msra.mxu0 %v247
    %265 = vmatpush.msra.mxu0 %v246
    %266 = vmatpush.msra.mxu0 %v245
    %267 = vmatpush.msra.mxu0 %v244
    %268 = vmatpush.msra.mxu0 %v243
    %269 = vmatpush.msra.mxu0 %v242
    %270 = vmatpush.msra.mxu0 %v241
    %271 = vmatpush.msra.mxu0 %v240
    %272 = vmatmul.f32.gmra.mxu0 %v160
    %v273 = vpop.f32.mrf.mxu0
    %v274 = vadd.f32 0.0, %v273
    %275 = vmatmul.f32.gmra.mxu0 %v161
    %v276 = vpop.f32.mrf.mxu0
    %v277 = vadd.f32 0.0, %v276
    %278 = vdwg.mxu0
    %v279 = vadd.f32 %v235, %v274
    %v280 = vadd.f32 %v238, %v277
    %v281 = vld [vmem:[%s7] sm:$0x1]
    %v283 = vperm.slane %v281, 0
    %v285 = vadd.f32 %v279, %v283
    %v286 = vadd.f32 %v280, %v283
    %v287 = vmax.f32 %v285, 0.0
    %v288 = vmax.f32 %v286, 0.0
    %v289 = vld [vmem:[#allocation8] sm:$0xff]
    %v290 = vld [vmem:[#allocation8 + $0x8] sm:$0xff]
    %v291 = vld [vmem:[#allocation8 + $0x10] sm:$0xff]
    %v292 = vld [vmem:[#allocation8 + $0x18] sm:$0xff]
    %v293 = vld [vmem:[#allocation8 + $0x20] sm:$0xff]
    %v294 = vld [vmem:[#allocation8 + $0x28] sm:$0xff]
    %v295 = vld [vmem:[#allocation8 + $0x30] sm:$0xff]
    %v296 = vld [vmem:[#allocation8 + $0x38] sm:$0xff]
    %v297 = vld [vmem:[#allocation8 + $0x40] sm:$0xff]
    %v298 = vld [vmem:[#allocation8 + $0x48] sm:$0xff]
    %v299 = vld [vmem:[#allocation8 + $0x50] sm:$0xff]
    %v300 = vld [vmem:[#allocation8 + $0x58] sm:$0xff]
    %v301 = vld [vmem:[#allocation8 + $0x60] sm:$0xff]
    %v302 = vld [vmem:[#allocation8 + $0x68] sm:$0xff]
    %v303 = vld [vmem:[#allocation8 + $0x70] sm:$0xff]
    %v304 = vld [vmem:[#allocation8 + $0x78] sm:$0xff]
    %v305 = vld [vmem:[%s9] sm:$0x1]
    %v307 = vperm.slane %v305, 0
    %309 = vmatpush.msra.mxu0 %v304
    %310 = vmatpush.msra.mxu0 %v303
    %311 = vmatpush.msra.mxu0 %v302
    %312 = vmatpush.msra.mxu0 %v301
    %313 = vmatpush.msra.mxu0 %v300
    %314 = vmatpush.msra.mxu0 %v299
    %315 = vmatpush.msra.mxu0 %v298
    %316 = vmatpush.msra.mxu0 %v297
    %317 = vmatpush.msra.mxu0 %v296
    %318 = vmatpush.msra.mxu0 %v295
    %319 = vmatpush.msra.mxu0 %v294
    %320 = vmatpush.msra.mxu0 %v293
    %321 = vmatpush.msra.mxu0 %v292
    %322 = vmatpush.msra.mxu0 %v291
    %323 = vmatpush.msra.mxu0 %v290
    %324 = vmatpush.msra.mxu0 %v289
    %325 = vmatmul.f32.gmra.mxu0 %v287
    %v326 = vpop.f32.mrf.mxu0
    %v327 = vadd.f32 %v307, %v326
    %328 = vmatmul.f32.gmra.mxu0 %v288
    %v329 = vpop.f32.mrf.mxu0
    %v330 = vadd.f32 %v307, %v329
    %331 = vdwg.mxu0
    %332 = vst [vmem:[#allocation10] sm:$0xff] %v327
    %333 = vst [vmem:[#allocation10 + $0x8] sm:$0xff] %v330
    // Predicated region
    $region58: #{tpu_custom_call.1} parent=1 // pred_check
      _
    $region59: #{tpu_custom_call.1} parent=1 // pred_check_branch
      %335 = sbr.rel (0) target = $region61
    $region60: #{tpu_custom_call.1} parent=1 // pred_region
      %337 = vsyncadd [#allocation4], 0
      %s338 = sshll.u32 [#allocation10], 4
      %s339 = int_to_ptr.vmem [resolvable:$true] %s338
      %s340 = sshll.u32 %s10, 4
      %s341 = int_to_ptr.hbm [resolvable:$true] %s340
      %346 = dma.vmem_to_hbm [thread:$0]  %s339, 256, %s341, [#allocation4], 128, 128, 8
    $region61: #{tpu_custom_call.1} parent=1 // pred_fallthru
      _
    // Predicated region
    $region62: #{tpu_custom_call.1} parent=1 // pred_check
      _
    $region63: #{tpu_custom_call.1} parent=1 // pred_check_branch
      %348 = sbr.rel (0) target = $region65
    $region64: #{tpu_custom_call.1} parent=1 // pred_region
      %350 = dma.done [#allocation4], 256
    $region65: #{tpu_custom_call.1} parent=1 // pred_fallthru
      _
    %351 = vsyncpa [#allocation3], 1
    %352 = vsyncpa [#allocation6], 1
    %353 = vsyncpa [#allocation9], 1
    %354 = vsyncpa [#allocation4], 1

</llo_original>
